<compile_context>
chip_gen: v6e
topology: v6e:2x2x1
jax: 0.10.0
libtpu: 0.0.40
codegen_flags: <defaults>
</compile_context>

<pallas_src>
import functools

import jax
import jax.numpy as jnp
from jax.experimental import pallas as pl
from jax.experimental.pallas import tpu as pltpu

IGNORE_INDEX = 250
SMOOTH = 1.0


def _ce_dice_kernel(x_ref, t_ref, ce_out, cnt_out, inter_out,
                    ce_acc, cnt_acc, inter_acc,
                    *, hw, tile_hw, tiles_per_core, ignore_index):
    n = pl.program_id(1)
    j = pl.program_id(2)

    @pl.when((n == 0) & (j == 0))
    def _():
        ce_acc[...] = jnp.zeros_like(ce_acc)
        cnt_acc[...] = jnp.zeros_like(cnt_acc)
        inter_acc[...] = jnp.zeros_like(inter_acc)

    x = x_ref[0].astype(jnp.float32)          # (C, T): classes on sublanes
    t = t_ref[0]                              # (1, T): pixels on lanes
    c_dim, tile = x.shape

    # Global pixel index of every lane in this block (uses the *unclamped* tile
    # index so duplicate / out-of-range tiles are fully masked out).
    tile_idx = pl.program_id(0) * tiles_per_core + j
    pix = tile_idx * tile_hw + jax.lax.broadcasted_iota(jnp.int32, (1, tile), 1)
    pos_ok = pix < hw                          # masks ragged tail / duplicate tiles
    valid = pos_ok & (t != ignore_index)
    validf = valid.astype(jnp.float32)

    # Sanitize out-of-bounds lanes so exp/log stay finite.
    x = jnp.where(pos_ok, x, 0.0)

    # Numerically stable log-sum-exp over the class (sublane) axis.
    m = jnp.max(x, axis=0, keepdims=True)                          # (1, T)
    lse = jnp.log(jnp.sum(jnp.exp(x - m), axis=0, keepdims=True)) + m

    # Logit of the target class (0 for ignored / OOB lanes).
    class_ids = jax.lax.broadcasted_iota(jnp.int32, (c_dim, tile), 0)
    x_t = jnp.sum(jnp.where(class_ids == t, x, 0.0), axis=0, keepdims=True)

    ce_acc[...] += (lse - x_t) * validf            # per-pixel cross entropy
    cnt_acc[...] += validf                         # valid pixel count
    inter_acc[...] += jnp.exp(x_t - lse) * validf  # softmax prob of target class

    @pl.when((n == pl.num_programs(1) - 1) & (j == pl.num_programs(2) - 1))
    def _():
        ce_out[0] = jnp.sum(ce_acc[...], axis=1, keepdims=True)
        cnt_out[0] = jnp.sum(cnt_acc[...], axis=1, keepdims=True)
        inter_out[0] = jnp.sum(inter_acc[...], axis=1, keepdims=True)


def _floor128(v):
    return (v // 128) * 128


def ce_dice_loss(logits, target, *, ignore_index=IGNORE_INDEX, smooth=SMOOTH,
                 tile=2048, num_cores=2):
    """logits: (N, C, H, W) float; target: (N, H, W) int. Returns scalar loss."""
    n, c, h, w = logits.shape
    hw = h * w

    # Metadata-only views of the contiguous NCHW tensors (no transpose, no pad).
    x = logits.reshape(n, c, hw)
    t = target.reshape(n, 1, hw).astype(jnp.int32)

    # Pick the pixel tile: large (amortizes per-grid-step overhead), multiple of
    # 128, and capped so double-buffered blocks + accumulators stay well inside
    # the default scoped-VMEM budget on every generation (v5e: 16 MiB).
    bytes_per_pix = 2 * c * x.dtype.itemsize + 2 * 4 + 3 * 4
    vmem_cap = (8 * 1024 * 1024) // max(bytes_per_pix, 1)
    max_tile = max(128, min(_floor128(tile), _floor128(vmem_cap)))
    if hw <= max_tile:
        tile_hw = hw            # single tile, full-extent block on the lane axis
    else:
        tile_hw = max_tile      # multiple of 128; last block is partial, masked

    num_tiles = -(-hw // tile_hw)
    tiles_per_core = -(-num_tiles // num_cores)

    kernel = functools.partial(
        _ce_dice_kernel, hw=hw, tile_hw=tile_hw,
        tiles_per_core=tiles_per_core, ignore_index=ignore_index)

    def _in_map(ci, ni, ji):
        # Clamp so the DMA always stays within [0, num_tiles); over-range
        # (duplicate) tiles are zeroed by the in-kernel position mask.
        return (ni, 0, jnp.minimum(ci * tiles_per_core + ji, num_tiles - 1))

    part_shape = jax.ShapeDtypeStruct((num_cores, 1, 1), jnp.float32)
    out_spec = pl.BlockSpec((1, 1, 1), lambda ci, ni, ji: (ci, 0, 0))

    ce_p, cnt_p, inter_p = pl.pallas_call(
        kernel,
        out_shape=(part_shape, part_shape, part_shape),
        grid_spec=pltpu.PrefetchScalarGridSpec(
            num_scalar_prefetch=0,
            grid=(num_cores, n, tiles_per_core),
            in_specs=[
                pl.BlockSpec((1, c, tile_hw), _in_map),
                pl.BlockSpec((1, 1, tile_hw), _in_map),
            ],
            out_specs=(out_spec, out_spec, out_spec),
            scratch_shapes=[pltpu.VMEM((1, tile_hw), jnp.float32)] * 3,
        ),
        compiler_params=pltpu.CompilerParams(
            dimension_semantics=("parallel", "arbitrary", "arbitrary")),
    )(x, t)

    ce_sum = jnp.sum(ce_p)
    cnt = jnp.sum(cnt_p)
    inter = jnp.sum(inter_p)
    # NOTE: if every pixel is ignore_index, cnt == 0 and CE is NaN, matching
    # nn.CrossEntropyLoss(reduction='mean') behavior.
    ce = ce_sum / cnt
    dice = 1.0 - (2.0 * inter + smooth) / (2.0 * cnt + smooth)
    return ce + dice


def ce_dice_loss_ref(logits, target, *, ignore_index=IGNORE_INDEX,
                     smooth=SMOOTH):
    """Pure-JAX reference (full, unsimplified computation) for validation."""
    n, c, h, w = logits.shape
    x = jnp.transpose(logits, (0, 2, 3, 1)).reshape(-1, c).astype(jnp.float32)
    t = target.reshape(-1)
    valid = t != ignore_index
    tc = jnp.where(valid, t, 0)
    lse = jax.scipy.special.logsumexp(x, axis=-1)
    ce_row = lse - x[jnp.arange(x.shape[0]), tc]
    ce = jnp.sum(jnp.where(valid, ce_row, 0.0)) / jnp.sum(valid)
    p = jax.nn.softmax(x, axis=-1)
    onehot = jax.nn.one_hot(tc, c) * valid[:, None]
    inter = jnp.sum(p * onehot)
    psum = jnp.sum(p * valid[:, None])
    tsum = jnp.sum(onehot)
    dice = 1.0 - (2.0 * inter + smooth) / (psum + tsum + smooth)
    return ce + dice


if __name__ == "__main__":
    key = jax.random.PRNGKey(0)
    k1, k2 = jax.random.split(key)

    # Primary config: batch=2, classes=4, 16x16 spatial, with ignored pixels.
    N, C, H, W = 2, 4, 16, 16
    logits = jax.random.normal(k1, (N, C, H, W), dtype=jnp.float32)
    target = jax.random.randint(k2, (N, H, W), 0, C, dtype=jnp.int32)
    target = target.at[0, 0, :3].set(IGNORE_INDEX)

    loss = jax.block_until_ready(ce_dice_loss(logits, target))
    ref = jax.block_until_ready(ce_dice_loss_ref(logits, target))
    assert jnp.isfinite(loss), "loss is not finite"
    assert jnp.allclose(loss, ref, rtol=1e-5, atol=1e-5), (loss, ref)

    # Second config: ragged pixel count (H*W not a multiple of the tile) and odd
    # class count, exercising the in-kernel tail masking and the 2-way tile split.
    k3, k4 = jax.random.split(k2)
    N2, C2, H2, W2 = 1, 5, 10, 20
    logits2 = jax.random.normal(k3, (N2, C2, H2, W2), dtype=jnp.float32)
    target2 = jax.random.randint(k4, (N2, H2, W2), 0, C2, dtype=jnp.int32)
    loss2 = jax.block_until_ready(ce_dice_loss(logits2, target2, tile=128))
    ref2 = jax.block_until_ready(ce_dice_loss_ref(logits2, target2))
    assert jnp.allclose(loss2, ref2, rtol=1e-5, atol=1e-5), (loss2, ref2)

    print("KERNEL_OK")
</pallas_src>

<mosaic_0001>
module attributes {stable_mosaic.version = 11 : i64} {
  func.func @_ce_dice_kernel(%arg0: i32, %arg1: i32, %arg2: i32, %arg3: memref<1x4x256xf32, #tpu.memory_space<vmem>>, %arg4: memref<1x1x256xi32, #tpu.memory_space<vmem>>, %arg5: memref<1x1x1xf32, #tpu.memory_space<vmem>>, %arg6: memref<1x1x1xf32, #tpu.memory_space<vmem>>, %arg7: memref<1x1x1xf32, #tpu.memory_space<vmem>>, %arg8: memref<1x256xf32, #tpu.memory_space<vmem>>, %arg9: memref<1x256xf32, #tpu.memory_space<vmem>>, %arg10: memref<1x256xf32, #tpu.memory_space<vmem>>) attributes {dimension_semantics = [#tpu.dimension_semantics<parallel>, #tpu.dimension_semantics<arbitrary>, #tpu.dimension_semantics<arbitrary>], iteration_bounds = array<i64: 2, 2, 1>, scalar_prefetch = 0 : i64, scratch_operands = 3 : i64, tpu.core_type = #tpu.core_type<tc>, window_params = [{transform_indices = @transform_0, window_bounds = array<i64: 1, 4, 256>}, {transform_indices = @transform_1, window_bounds = array<i64: 1, 1, 256>}, {transform_indices = @transform_2, window_bounds = array<i64: 1, 1, 1>}, {transform_indices = @transform_3, window_bounds = array<i64: 1, 1, 1>}, {transform_indices = @transform_4, window_bounds = array<i64: 1, 1, 1>}]} {
    %c0_i32 = arith.constant 0 : i32
    %0 = arith.cmpi eq, %arg1, %c0_i32 : i32
    %c0_i32_0 = arith.constant 0 : i32
    %1 = arith.cmpi eq, %arg2, %c0_i32_0 : i32
    %2 = arith.andi %0, %1 : i1
    %3 = arith.extui %2 : i1 to i32
    %c0_i32_1 = arith.constant 0 : i32
    %4 = arith.cmpi ne, %3, %c0_i32_1 : i32
    scf.if %4 {
      %cst_27 = arith.constant 0.000000e+00 : f32
      %61 = vector.broadcast %cst_27 : f32 to vector<1x256xf32>
      %c0_28 = arith.constant 0 : index
      %c0_29 = arith.constant 0 : index
      %62 = vector.load %arg8[%c0_28, %c0_29] : memref<1x256xf32, #tpu.memory_space<vmem>>, vector<1x256xf32>
      tpu.vector_store %arg8[%c0_28, %c0_29], %61 {strides = array<i32>} : memref<1x256xf32, #tpu.memory_space<vmem>>, vector<1x256xf32>,
      %cst_30 = arith.constant 0.000000e+00 : f32
      %63 = vector.broadcast %cst_30 : f32 to vector<1x256xf32>
      %c0_31 = arith.constant 0 : index
      %c0_32 = arith.constant 0 : index
      %64 = vector.load %arg9[%c0_31, %c0_32] : memref<1x256xf32, #tpu.memory_space<vmem>>, vector<1x256xf32>
      tpu.vector_store %arg9[%c0_31, %c0_32], %63 {strides = array<i32>} : memref<1x256xf32, #tpu.memory_space<vmem>>, vector<1x256xf32>,
      %cst_33 = arith.constant 0.000000e+00 : f32
      %65 = vector.broadcast %cst_33 : f32 to vector<1x256xf32>
      %c0_34 = arith.constant 0 : index
      %c0_35 = arith.constant 0 : index
      %66 = vector.load %arg10[%c0_34, %c0_35] : memref<1x256xf32, #tpu.memory_space<vmem>>, vector<1x256xf32>
      tpu.vector_store %arg10[%c0_34, %c0_35], %65 {strides = array<i32>} : memref<1x256xf32, #tpu.memory_space<vmem>>, vector<1x256xf32>,
    } else {
    }
    %c0 = arith.constant 0 : index
    %c0_2 = arith.constant 0 : index
    %c0_3 = arith.constant 0 : index
    %5 = vector.load %arg3[%c0, %c0_2, %c0_3] : memref<1x4x256xf32, #tpu.memory_space<vmem>>, vector<1x4x256xf32>
    %6 = vector.shape_cast %5 : vector<1x4x256xf32> to vector<4x256xf32>
    %c0_4 = arith.constant 0 : index
    %c0_5 = arith.constant 0 : index
    %c0_6 = arith.constant 0 : index
    %7 = vector.load %arg4[%c0_4, %c0_5, %c0_6] : memref<1x1x256xi32, #tpu.memory_space<vmem>>, vector<1x1x256xi32>
    %8 = vector.shape_cast %7 : vector<1x1x256xi32> to vector<1x256xi32>
    %c1_i32 = arith.constant 1 : i32
    %9 = arith.muli %arg0, %c1_i32 : i32
    %10 = arith.addi %9, %arg2 : i32
    %c256_i32 = arith.constant 256 : i32
    %11 = arith.muli %10, %c256_i32 : i32
    %12 = tpu.iota {dimensions = array<i32: 1>} : vector<1x256xi32>
    %13 = vector.broadcast %11 : i32 to vector<1x256xi32>
    %14 = arith.addi %13, %12 : vector<1x256xi32>
    %c256_i32_7 = arith.constant 256 : i32
    %15 = vector.broadcast %c256_i32_7 : i32 to vector<1x256xi32>
    %16 = arith.cmpi slt, %14, %15 : vector<1x256xi32>
    %c250_i32 = arith.constant 250 : i32
    %17 = vector.broadcast %c250_i32 : i32 to vector<1x256xi32>
    %18 = arith.cmpi ne, %8, %17 : vector<1x256xi32>
    %19 = arith.andi %16, %18 : vector<1x256xi1>
    %20 = arith.extui %19 : vector<1x256xi1> to vector<1x256xi32>
    %21 = arith.sitofp %20 : vector<1x256xi32> to vector<1x256xf32>
    %cst = arith.constant 0.000000e+00 : f32
    %22 = vector.shape_cast %16 : vector<1x256xi1> to vector<1x256xi1>
    %23 = vector.broadcast %22 : vector<1x256xi1> to vector<4x256xi1>
    %24 = vector.broadcast %cst : f32 to vector<4x256xf32>
    %25 = arith.select %23, %6, %24 : vector<4x256xi1>, vector<4x256xf32>
    %cst_8 = arith.constant dense<0xFF800000> : vector<256xf32>
    %26 = vector.multi_reduction <maximumf>, %25, %cst_8 [0] : vector<4x256xf32> to vector<256xf32>
    %27 = vector.shape_cast %26 : vector<256xf32> to vector<1x256xf32>
    %28 = vector.broadcast %27 : vector<1x256xf32> to vector<4x256xf32>
    %29 = arith.subf %25, %28 : vector<4x256xf32>
    %30 = math.exp %29 : vector<4x256xf32>
    %cst_9 = arith.constant dense<0.000000e+00> : vector<256xf32>
    %31 = vector.multi_reduction <add>, %30, %cst_9 [0] : vector<4x256xf32> to vector<256xf32>
    %32 = vector.shape_cast %31 : vector<256xf32> to vector<1x256xf32>
    %33 = math.log %32 : vector<1x256xf32>
    %34 = arith.addf %33, %27 : vector<1x256xf32>
    %35 = tpu.iota {dimensions = array<i32: 0>} : vector<4x256xi32>
    %36 = vector.broadcast %8 : vector<1x256xi32> to vector<4x256xi32>
    %37 = arith.cmpi eq, %35, %36 : vector<4x256xi32>
    %cst_10 = arith.constant 0.000000e+00 : f32
    %38 = vector.broadcast %cst_10 : f32 to vector<4x256xf32>
    %39 = arith.select %37, %25, %38 : vector<4x256xi1>, vector<4x256xf32>
    %cst_11 = arith.constant dense<0.000000e+00> : vector<256xf32>
    %40 = vector.multi_reduction <add>, %39, %cst_11 [0] : vector<4x256xf32> to vector<256xf32>
    %41 = vector.shape_cast %40 : vector<256xf32> to vector<1x256xf32>
    %c0_12 = arith.constant 0 : index
    %c0_13 = arith.constant 0 : index
    %42 = vector.load %arg8[%c0_12, %c0_13] : memref<1x256xf32, #tpu.memory_space<vmem>>, vector<1x256xf32>
    %43 = arith.subf %34, %41 : vector<1x256xf32>
    %44 = arith.mulf %43, %21 : vector<1x256xf32>
    %45 = arith.addf %42, %44 : vector<1x256xf32>
    %c0_14 = arith.constant 0 : index
    %c0_15 = arith.constant 0 : index
    %46 = vector.load %arg8[%c0_14, %c0_15] : memref<1x256xf32, #tpu.memory_space<vmem>>, vector<1x256xf32>
    tpu.vector_store %arg8[%c0_14, %c0_15], %45 {strides = array<i32>} : memref<1x256xf32, #tpu.memory_space<vmem>>, vector<1x256xf32>,
    %c0_16 = arith.constant 0 : index
    %c0_17 = arith.constant 0 : index
    %47 = vector.load %arg9[%c0_16, %c0_17] : memref<1x256xf32, #tpu.memory_space<vmem>>, vector<1x256xf32>
    %48 = arith.addf %47, %21 : vector<1x256xf32>
    %c0_18 = arith.constant 0 : index
    %c0_19 = arith.constant 0 : index
    %49 = vector.load %arg9[%c0_18, %c0_19] : memref<1x256xf32, #tpu.memory_space<vmem>>, vector<1x256xf32>
    tpu.vector_store %arg9[%c0_18, %c0_19], %48 {strides = array<i32>} : memref<1x256xf32, #tpu.memory_space<vmem>>, vector<1x256xf32>,
    %c0_20 = arith.constant 0 : index
    %c0_21 = arith.constant 0 : index
    %50 = vector.load %arg10[%c0_20, %c0_21] : memref<1x256xf32, #tpu.memory_space<vmem>>, vector<1x256xf32>
    %51 = arith.subf %41, %34 : vector<1x256xf32>
    %52 = math.exp %51 : vector<1x256xf32>
    %53 = arith.mulf %52, %21 : vector<1x256xf32>
    %54 = arith.addf %50, %53 : vector<1x256xf32>
    %c0_22 = arith.constant 0 : index
    %c0_23 = arith.constant 0 : index
    %55 = vector.load %arg10[%c0_22, %c0_23] : memref<1x256xf32, #tpu.memory_space<vmem>>, vector<1x256xf32>
    tpu.vector_store %arg10[%c0_22, %c0_23], %54 {strides = array<i32>} : memref<1x256xf32, #tpu.memory_space<vmem>>, vector<1x256xf32>,
    %c1_i32_24 = arith.constant 1 : i32
    %56 = arith.cmpi eq, %arg1, %c1_i32_24 : i32
    %c0_i32_25 = arith.constant 0 : i32
    %57 = arith.cmpi eq, %arg2, %c0_i32_25 : i32
    %58 = arith.andi %56, %57 : i1
    %59 = arith.extui %58 : i1 to i32
    %c0_i32_26 = arith.constant 0 : i32
    %60 = arith.cmpi ne, %59, %c0_i32_26 : i32
    scf.if %60 {
      %c0_27 = arith.constant 0 : index
      %c0_28 = arith.constant 0 : index
      %61 = vector.load %arg8[%c0_27, %c0_28] : memref<1x256xf32, #tpu.memory_space<vmem>>, vector<1x256xf32>
      %cst_29 = arith.constant dense<0.000000e+00> : vector<1xf32>
      %62 = vector.multi_reduction <add>, %61, %cst_29 [1] : vector<1x256xf32> to vector<1xf32>
      %63 = vector.shape_cast %62 : vector<1xf32> to vector<1x1xf32>
      %c0_30 = arith.constant 0 : index
      %c0_31 = arith.constant 0 : index
      %c0_32 = arith.constant 0 : index
      %64 = vector.load %arg5[%c0_30, %c0_31, %c0_32] : memref<1x1x1xf32, #tpu.memory_space<vmem>>, vector<1x1x1xf32>
      %65 = vector.shape_cast %64 : vector<1x1x1xf32> to vector<1x1xf32>
      %66 = vector.shape_cast %63 : vector<1x1xf32> to vector<1x1x1xf32>
      tpu.vector_store %arg5[%c0_30, %c0_31, %c0_32], %66 {strides = array<i32>} : memref<1x1x1xf32, #tpu.memory_space<vmem>>, vector<1x1x1xf32>,
      %c0_33 = arith.constant 0 : index
      %c0_34 = arith.constant 0 : index
      %67 = vector.load %arg9[%c0_33, %c0_34] : memref<1x256xf32, #tpu.memory_space<vmem>>, vector<1x256xf32>
      %cst_35 = arith.constant dense<0.000000e+00> : vector<1xf32>
      %68 = vector.multi_reduction <add>, %67, %cst_35 [1] : vector<1x256xf32> to vector<1xf32>
      %69 = vector.shape_cast %68 : vector<1xf32> to vector<1x1xf32>
      %c0_36 = arith.constant 0 : index
      %c0_37 = arith.constant 0 : index
      %c0_38 = arith.constant 0 : index
      %70 = vector.load %arg6[%c0_36, %c0_37, %c0_38] : memref<1x1x1xf32, #tpu.memory_space<vmem>>, vector<1x1x1xf32>
      %71 = vector.shape_cast %70 : vector<1x1x1xf32> to vector<1x1xf32>
      %72 = vector.shape_cast %69 : vector<1x1xf32> to vector<1x1x1xf32>
      tpu.vector_store %arg6[%c0_36, %c0_37, %c0_38], %72 {strides = array<i32>} : memref<1x1x1xf32, #tpu.memory_space<vmem>>, vector<1x1x1xf32>,
      %c0_39 = arith.constant 0 : index
      %c0_40 = arith.constant 0 : index
      %73 = vector.load %arg10[%c0_39, %c0_40] : memref<1x256xf32, #tpu.memory_space<vmem>>, vector<1x256xf32>
      %cst_41 = arith.constant dense<0.000000e+00> : vector<1xf32>
      %74 = vector.multi_reduction <add>, %73, %cst_41 [1] : vector<1x256xf32> to vector<1xf32>
      %75 = vector.shape_cast %74 : vector<1xf32> to vector<1x1xf32>
      %c0_42 = arith.constant 0 : index
      %c0_43 = arith.constant 0 : index
      %c0_44 = arith.constant 0 : index
      %76 = vector.load %arg7[%c0_42, %c0_43, %c0_44] : memref<1x1x1xf32, #tpu.memory_space<vmem>>, vector<1x1x1xf32>
      %77 = vector.shape_cast %76 : vector<1x1x1xf32> to vector<1x1xf32>
      %78 = vector.shape_cast %75 : vector<1x1xf32> to vector<1x1x1xf32>
      tpu.vector_store %arg7[%c0_42, %c0_43, %c0_44], %78 {strides = array<i32>} : memref<1x1x1xf32, #tpu.memory_space<vmem>>, vector<1x1x1xf32>,
    } else {
    }
    return
  }
  func.func @transform_0(%arg0: i32, %arg1: i32, %arg2: i32) -> (i32, i32, i32) {
    %c1_i32 = arith.constant 1 : i32
    %0 = arith.muli %arg0, %c1_i32 : i32
    %1 = arith.addi %0, %arg2 : i32
    %c0_i32 = arith.constant 0 : i32
    %2 = arith.minsi %1, %c0_i32 : i32
    %c0_i32_0 = arith.constant 0 : i32
    %c0_i32_1 = arith.constant 0 : i32
    return %arg1, %c0_i32_0, %2 : i32, i32, i32
  }
  func.func @transform_1(%arg0: i32, %arg1: i32, %arg2: i32) -> (i32, i32, i32) {
    %c1_i32 = arith.constant 1 : i32
    %0 = arith.muli %arg0, %c1_i32 : i32
    %1 = arith.addi %0, %arg2 : i32
    %c0_i32 = arith.constant 0 : i32
    %2 = arith.minsi %1, %c0_i32 : i32
    %c0_i32_0 = arith.constant 0 : i32
    %c0_i32_1 = arith.constant 0 : i32
    return %arg1, %c0_i32_0, %2 : i32, i32, i32
  }
  func.func @transform_2(%arg0: i32, %arg1: i32, %arg2: i32) -> (i32, i32, i32) {
    %c0_i32 = arith.constant 0 : i32
    %c0_i32_0 = arith.constant 0 : i32
    %c0_i32_1 = arith.constant 0 : i32
    return %arg0, %c0_i32, %c0_i32_0 : i32, i32, i32
  }
  func.func @transform_3(%arg0: i32, %arg1: i32, %arg2: i32) -> (i32, i32, i32) {
    %c0_i32 = arith.constant 0 : i32
    %c0_i32_0 = arith.constant 0 : i32
    %c0_i32_1 = arith.constant 0 : i32
    return %arg0, %c0_i32, %c0_i32_0 : i32, i32, i32
  }
  func.func @transform_4(%arg0: i32, %arg1: i32, %arg2: i32) -> (i32, i32, i32) {
    %c0_i32 = arith.constant 0 : i32
    %c0_i32_0 = arith.constant 0 : i32
    %c0_i32_1 = arith.constant 0 : i32
    return %arg0, %c0_i32, %c0_i32_0 : i32, i32, i32
  }
}

</mosaic_0001>

<llo_original>
// kernel: tpu_custom_call.1
$region0: #{tpu_custom_call.1}
  #allocation0 [shape = 'u32[]', space=smem, size = 0x4, offset = 0x4, fixed_abs, tag = 'smem constant byte address 0x4 - core index']
  #allocation1 [shape = 'u32[144,128]{1,0:T(1,128)}', space=vmem, size = 0x12000, scoped, tag = 'internal scratch']
  #allocation2 [shape = 'f32[1,256]{1,0:T(1,128)}', space=vmem, size = 0x400, scoped, tag = 'scratch operand']
  #allocation3 [shape = 'f32[1,256]{1,0:T(1,128)}', space=vmem, size = 0x400, scoped, tag = 'scratch operand']
  #allocation4 [shape = 'f32[1,256]{1,0:T(1,128)}', space=vmem, size = 0x400, scoped, tag = 'scratch operand']
  %s0 = inlined_call_operand.hbm [shape: f32[2,4,256], index: 0, kind: input, shape index: {}]
  %s1 = inlined_call_operand.hbm [shape: s32[2,1,256], index: 1, kind: input, shape index: {}]
  %s2 = inlined_call_operand.vmem [shape: f32[2,1,1], index: 2, kind: output, shape index: {0}]
  %s3 = inlined_call_operand.vmem [shape: f32[2,1,1], index: 3, kind: output, shape index: {1}]
  %s4 = inlined_call_operand.vmem [shape: f32[2,1,1], index: 4, kind: output, shape index: {2}]
  %5 = xla_tuple %s2, %s3, %s4
  %s6 = sld [smem:[#allocation0]]
  $region73: #{tpu_custom_call.1} parent=0
    _
  %s8 = ssub.s32 1, %s6
  %s9 = scalar_select 0, %s8, %s6
  $region1: #{tpu_custom_call.1} parent=0
    #allocation5 [shape = 'u8[8192]{0}', space=vmem, size = 0x2000, scoped, tag = 'input window, operand 0']
    #allocation6 [shape = 's32[2]{0}', space=sflag, size = 0x8, scoped, tag = 'scoped memory for tpu_custom_call.1']
    #allocation7 [shape = 'u8[2048]{0}', space=vmem, size = 0x800, scoped, tag = 'input window, operand 1']
    #allocation8 [shape = 's32[2]{0}', space=sflag, size = 0x8, scoped, tag = 'scoped memory for tpu_custom_call.1']
    %10 = vsyncpa [#allocation6], 0
    %s11 = scalar_lea.sflag [#allocation6], 1
    %12 = vsyncpa %s11, 0
    %13 = vsyncpa [#allocation8], 0
    %s14 = scalar_lea.sflag [#allocation8], 1
    %15 = vsyncpa %s14, 0
    loop: start=0, step=1, limit=6
    $region2: #{tpu_custom_call.1} parent=1 // loop_pre_header
      _
    $region3: #{tpu_custom_call.1} parent=1 // loop_header
      %s17 = sphi 0, %s21
      %p18 = scmp.ge.s32.totalorder %s17, 6
      %s24 = sphi 0, %s43
      %s25 = sphi 0, %s39
      %s26 = sphi 0, %s35
      %s27 = sphi 0, %s24
      %s28 = sphi 0, %s25
      %s29 = sphi 0, %s26
      %s30 = sphi 0, %s27
      %s31 = sphi 0, %s28
      %s32 = sphi 0, %s29
      %s54 = sphi 0, %s56
      %s57 = sphi 0, %s54
      %s58 = sphi 0, %s57
      %s74 = sphi 0, %s58
      %s88 = sphi 0, %s90
      %s91 = sphi 0, %s88
      %s92 = sphi 0, %s91
      %s108 = sphi 0, %s92
      %s114 = sphi 0, %s116
      %s117 = sphi 0, %s114
      %s118 = sphi 0, %s117
      %s134 = sphi 0, %s118
      %s140 = sphi 0, %s142
      %s143 = sphi 0, %s140
      %s144 = sphi 0, %s143
      %s160 = sphi 0, %s144
      %s166 = sphi 0, %s168
      %s169 = sphi 0, %s166
      %s170 = sphi 0, %s169
      %s186 = sphi 0, %s170
    $region4: #{tpu_custom_call.1} parent=1 // loop_header_branch
      %20 = sbr.rel (%p18) target = $region8
    $region5: #{tpu_custom_call.1} parent=1 // loop_body
      %s22 = ssub.s32 %s17, 1
      %s23 = ssub.s32 %s17, 2
      %s33 = sadd.s32 1, %s26
      %p34 = scmp.ge.s32.totalorder %s33, 1
      %s35 = scalar_select %p34, 0, %s33
      %s36 = sadd.s32 1, %s25
      %s37 = scalar_select %p34, %s36, %s25
      %p38 = scmp.ge.s32.totalorder %s37, 2
      %s39 = scalar_select %p38, 0, %s37
      %s40 = sadd.s32 1, %s24
      %s41 = scalar_select %p38, %s40, %s24
      %p42 = scmp.ge.s32.totalorder %s41, 2
      %s43 = scalar_select %p42, 0, %s41
      %s44 = sadd.s32 %s24, %s26
      %p45 = scmp.lt.s32.totalorder %s44, 0
      %s46 = scalar_select %p45, %s44, 0
      %s47 = sadd.s32 %s43, %s35
      %p48 = scmp.lt.s32.totalorder %s47, 0
      %s49 = scalar_select %p48, %s47, 0
      %s50 = ssub.s32 %s25, %s39
      %s51 = ssub.s32 %s46, %s49
      %s52 = sor.u32 %s50, %s51
      %p53 = scmp.eq.s32.totalorder %s52, 0
      %s55 = sadd.s32 %s54, 1
      %s56 = scalar_select %p53, %s54, %s55
      %p59 = pneg %p53
      %p60 = scmp.eq.s32.totalorder %s17, 3
      %p61 = por %p59, %p60
      %p62 = scmp.ne.s32.totalorder %s54, %s57
      %p63 = scmp.eq.s32.totalorder %s17, 0
      %p64 = por %p62, %p63
      %p65 = scmp.ne.s32.totalorder %s54, %s57
      %p66 = scmp.eq.s32.totalorder %s22, 3
      %p67 = por %p65, %p66
      %p68 = scmp.ne.s32.totalorder %s57, %s58
      %p69 = scmp.eq.s32.totalorder %s22, 0
      %p70 = por %p68, %p69
      %p71 = scmp.ne.s32.totalorder %s57, %s58
      %p72 = scmp.eq.s32.totalorder %s23, 3
      %p73 = por %p71, %p72
      %p75 = scmp.ne.s32.totalorder %s58, %s74
      %p76 = scmp.eq.s32.totalorder %s23, 0
      %p77 = por %p75, %p76
      %s78 = sadd.s32 %s24, %s26
      %p79 = scmp.lt.s32.totalorder %s78, 0
      %s80 = scalar_select %p79, %s78, 0
      %s81 = sadd.s32 %s43, %s35
      %p82 = scmp.lt.s32.totalorder %s81, 0
      %s83 = scalar_select %p82, %s81, 0
      %s84 = ssub.s32 %s25, %s39
      %s85 = ssub.s32 %s80, %s83
      %s86 = sor.u32 %s84, %s85
      %p87 = scmp.eq.s32.totalorder %s86, 0
      %s89 = sadd.s32 %s88, 1
      %s90 = scalar_select %p87, %s88, %s89
      %p93 = pneg %p87
      %p94 = scmp.eq.s32.totalorder %s17, 3
      %p95 = por %p93, %p94
      %p96 = scmp.ne.s32.totalorder %s88, %s91
      %p97 = scmp.eq.s32.totalorder %s17, 0
      %p98 = por %p96, %p97
      %p99 = scmp.ne.s32.totalorder %s88, %s91
      %p100 = scmp.eq.s32.totalorder %s22, 3
      %p101 = por %p99, %p100
      %p102 = scmp.ne.s32.totalorder %s91, %s92
      %p103 = scmp.eq.s32.totalorder %s22, 0
      %p104 = por %p102, %p103
      %p105 = scmp.ne.s32.totalorder %s91, %s92
      %p106 = scmp.eq.s32.totalorder %s23, 3
      %p107 = por %p105, %p106
      %p109 = scmp.ne.s32.totalorder %s92, %s108
      %p110 = scmp.eq.s32.totalorder %s23, 0
      %p111 = por %p109, %p110
      %s112 = ssub.s32 %s24, %s43
      %p113 = scmp.eq.s32.totalorder %s112, 0
      %s115 = sadd.s32 %s114, 1
      %s116 = scalar_select %p113, %s114, %s115
      %p119 = pneg %p113
      %p120 = scmp.eq.s32.totalorder %s17, 3
      %p121 = por %p119, %p120
      %p122 = scmp.ne.s32.totalorder %s114, %s117
      %p123 = scmp.eq.s32.totalorder %s17, 0
      %p124 = por %p122, %p123
      %p125 = scmp.ne.s32.totalorder %s114, %s117
      %p126 = scmp.eq.s32.totalorder %s22, 3
      %p127 = por %p125, %p126
      %p128 = scmp.ne.s32.totalorder %s117, %s118
      %p129 = scmp.eq.s32.totalorder %s22, 0
      %p130 = por %p128, %p129
      %p131 = scmp.ne.s32.totalorder %s117, %s118
      %p132 = scmp.eq.s32.totalorder %s23, 3
      %p133 = por %p131, %p132
      %p135 = scmp.ne.s32.totalorder %s118, %s134
      %p136 = scmp.eq.s32.totalorder %s23, 0
      %p137 = por %p135, %p136
      %s138 = ssub.s32 %s24, %s43
      %p139 = scmp.eq.s32.totalorder %s138, 0
      %s141 = sadd.s32 %s140, 1
      %s142 = scalar_select %p139, %s140, %s141
      %p145 = pneg %p139
      %p146 = scmp.eq.s32.totalorder %s17, 3
      %p147 = por %p145, %p146
      %p148 = scmp.ne.s32.totalorder %s140, %s143
      %p149 = scmp.eq.s32.totalorder %s17, 0
      %p150 = por %p148, %p149
      %p151 = scmp.ne.s32.totalorder %s140, %s143
      %p152 = scmp.eq.s32.totalorder %s22, 3
      %p153 = por %p151, %p152
      %p154 = scmp.ne.s32.totalorder %s143, %s144
      %p155 = scmp.eq.s32.totalorder %s22, 0
      %p156 = por %p154, %p155
      %p157 = scmp.ne.s32.totalorder %s143, %s144
      %p158 = scmp.eq.s32.totalorder %s23, 3
      %p159 = por %p157, %p158
      %p161 = scmp.ne.s32.totalorder %s144, %s160
      %p162 = scmp.eq.s32.totalorder %s23, 0
      %p163 = por %p161, %p162
      %s164 = ssub.s32 %s24, %s43
      %p165 = scmp.eq.s32.totalorder %s164, 0
      %s167 = sadd.s32 %s166, 1
      %s168 = scalar_select %p165, %s166, %s167
      %p171 = pneg %p165
      %p172 = scmp.eq.s32.totalorder %s17, 3
      %p173 = por %p171, %p172
      %p174 = scmp.ne.s32.totalorder %s166, %s169
      %p175 = scmp.eq.s32.totalorder %s17, 0
      %p176 = por %p174, %p175
      %p177 = scmp.ne.s32.totalorder %s166, %s169
      %p178 = scmp.eq.s32.totalorder %s22, 3
      %p179 = por %p177, %p178
      %p180 = scmp.ne.s32.totalorder %s169, %s170
      %p181 = scmp.eq.s32.totalorder %s22, 0
      %p182 = por %p180, %p181
      %p183 = scmp.ne.s32.totalorder %s169, %s170
      %p184 = scmp.eq.s32.totalorder %s23, 3
      %p185 = por %p183, %p184
      %p187 = scmp.ne.s32.totalorder %s170, %s186
      %p188 = scmp.eq.s32.totalorder %s23, 0
      %p189 = por %p187, %p188
      %p190 = scmp.le.s32.totalorder 1, %s17
      %p191 = scmp.lt.s32.totalorder %s17, 5
      %p192 = pnand %p190, %p191
      %p193 = pneg %p192
      // Predicated region
      $region9: #{tpu_custom_call.1} parent=5 // pred_check
        _
      $region10: #{tpu_custom_call.1} parent=5 // pred_check_branch
        %195 = sbr.rel (%p192) target = $region12
      $region11: #{tpu_custom_call.1} parent=5 // pred_region
        %s196 = ssub.s32 %s17, 1
      $region12: #{tpu_custom_call.1} parent=5 // pred_fallthru
        _
      %p197 = scmp.lt.s32.totalorder %s17, 4
      // Predicated region
      $region13: #{tpu_custom_call.1} parent=5 // pred_check
        %p198 = pneg %p197
      $region14: #{tpu_custom_call.1} parent=5 // pred_check_branch
        %200 = sbr.rel (%p198) target = $region16
      $region15: #{tpu_custom_call.1} parent=5 // pred_region
        // Predicated region
        $region17: #{tpu_custom_call.1} parent=15 // pred_check
          %p201 = pneg %p64
        $region18: #{tpu_custom_call.1} parent=15 // pred_check_branch
          %203 = sbr.rel (%p201) target = $region20
        $region19: #{tpu_custom_call.1} parent=15 // pred_region
          %s204 = sand.u32 %s54, 1
          %s205 = scalar_lea.sflag [#allocation6], %s204
          %s206 = sand.u32 %s54, 1
          %s207 = smul.addr %s206, 8
          %s208 = scalar_lea.vmem [#allocation5], %s207
          %s209 = sadd.s32 %s24, %s26
          %p210 = scmp.lt.s32.totalorder %s209, 0
          %s211 = scalar_select %p210, %s209, 0
          %s212 = smul.u32 2, %s211
          %s214 = ssub.s32 128, 128
          %215 = vsyncadd %s205, %s214
          %s216 = smul.addr %s25, 2
          %s217 = sadd.s32 %s212, %s216
          %s218 = smul.addr %s217, 64
          %s219 = scalar_lea.hbm %s0, %s218
          %s221 = sshll.u32 %s208, 4
          %s222 = int_to_ptr.vmem [resolvable:$true] %s221
          %224 = dma.hbm_to_vmem [thread:$0]  %s219, 128, %s222, %s205
        $region20: #{tpu_custom_call.1} parent=15 // pred_fallthru
          _
        // Predicated region
        $region21: #{tpu_custom_call.1} parent=15 // pred_check
          %p225 = pneg %p98
        $region22: #{tpu_custom_call.1} parent=15 // pred_check_branch
          %227 = sbr.rel (%p225) target = $region24
        $region23: #{tpu_custom_call.1} parent=15 // pred_region
          %s228 = sand.u32 %s88, 1
          %s229 = scalar_lea.sflag [#allocation8], %s228
          %s230 = sand.u32 %s88, 1
          %s231 = smul.addr %s230, 2
          %s232 = scalar_lea.vmem [#allocation7], %s231
          %s233 = sadd.s32 %s24, %s26
          %p234 = scmp.lt.s32.totalorder %s233, 0
          %s235 = scalar_select %p234, %s233, 0
          %s236 = smul.u32 2, %s235
          %s238 = ssub.s32 32, 32
          %239 = vsyncadd %s229, %s238
          %s240 = smul.addr %s25, 2
          %s241 = sadd.s32 %s236, %s240
          %s242 = smul.addr %s241, 16
          %s243 = scalar_lea.hbm %s1, %s242
          %s245 = sshll.u32 %s232, 4
          %s246 = int_to_ptr.vmem [resolvable:$true] %s245
          %248 = dma.hbm_to_vmem [thread:$0]  %s243, 32, %s246, %s229
        $region24: #{tpu_custom_call.1} parent=15 // pred_fallthru
          _
      $region16: #{tpu_custom_call.1} parent=5 // pred_fallthru
        _
      %p249 = scmp.le.s32.totalorder 1, %s17
      %p250 = scmp.lt.s32.totalorder %s17, 5
      %p251 = pnand %p249, %p250
      %p252 = pneg %p251
      // Predicated region
      $region25: #{tpu_custom_call.1} parent=5 // pred_check
        _
      $region26: #{tpu_custom_call.1} parent=5 // pred_check_branch
        %254 = sbr.rel (%p251) target = $region28
      $region27: #{tpu_custom_call.1} parent=5 // pred_region
        %s255 = ssub.s32 %s17, 1
        %s256 = sand.u32 %s57, 1
        %s257 = scalar_lea.sflag [#allocation6], %s256
        %s258 = sand.u32 %s57, 1
        %s259 = smul.addr %s258, 8
        %s260 = scalar_lea.vmem [#allocation5], %s259
        // Predicated region
        $region29: #{tpu_custom_call.1} parent=27 // pred_check
          %p261 = pneg %p70
        $region30: #{tpu_custom_call.1} parent=27 // pred_check_branch
          %263 = sbr.rel (%p261) target = $region32
        $region31: #{tpu_custom_call.1} parent=27 // pred_region
          %264 = dma.done %s257, 128
        $region32: #{tpu_custom_call.1} parent=27 // pred_fallthru
          _
        %s265 = sand.u32 %s91, 1
        %s266 = scalar_lea.sflag [#allocation8], %s265
        %s267 = sand.u32 %s91, 1
        %s268 = smul.addr %s267, 2
        %s269 = scalar_lea.vmem [#allocation7], %s268
        // Predicated region
        $region33: #{tpu_custom_call.1} parent=27 // pred_check
          %p270 = pneg %p104
        $region34: #{tpu_custom_call.1} parent=27 // pred_check_branch
          %272 = sbr.rel (%p270) target = $region36
        $region35: #{tpu_custom_call.1} parent=27 // pred_region
          %273 = dma.done %s266, 32
        $region36: #{tpu_custom_call.1} parent=27 // pred_fallthru
          _
        %s274 = sand.u32 %s57, 1
        %s275 = scalar_lea.sflag [#allocation6], %s274
        %s276 = sand.u32 %s57, 1
        %s277 = smul.addr %s276, 8
        %s278 = scalar_lea.vmem [#allocation5], %s277
        %p279 = pneg %p70
        %p280 = pneg %p67
        %s281 = sand.u32 %s91, 1
        %s282 = scalar_lea.sflag [#allocation8], %s281
        %s283 = sand.u32 %s91, 1
        %s284 = smul.addr %s283, 2
        %s285 = scalar_lea.vmem [#allocation7], %s284
        %p286 = pneg %p104
        %p287 = pneg %p101
        %p288 = pneg %p130
        %p289 = pneg %p127
        %p290 = scmp.lt.s32.totalorder %s27, 1
        %s291 = scalar_select %p290, %s27, 1
        %s292 = scalar_lea.vmem %s2, %s291
        %p293 = pneg %p156
        %p294 = pneg %p153
        %p295 = scmp.lt.s32.totalorder %s27, 1
        %s296 = scalar_select %p295, %s27, 1
        %s297 = scalar_lea.vmem %s3, %s296
        %p298 = pneg %p182
        %p299 = pneg %p179
        %p300 = scmp.lt.s32.totalorder %s27, 1
        %s301 = scalar_select %p300, %s27, 1
        %s302 = scalar_lea.vmem %s4, %s301
        %s303 = sadd.s32 %s27, %s29
        %p304 = scmp.lt.s32.totalorder %s303, 0
        %s305 = scalar_select %p304, %s303, 0
        %s306 = smul.u32 2, %s305
        %s307 = sadd.s32 %s27, %s29
        %p308 = scmp.lt.s32.totalorder %s307, 0
        %s309 = scalar_select %p308, %s307, 0
        %s310 = smul.u32 2, %s309
        %p311 = scmp.lt.s32.totalorder %s27, 1
        %s312 = scalar_select %p311, %s27, 1
        %s313 = scalar_lea.vmem %s2, %s312
        %p314 = scmp.lt.s32.totalorder %s27, 1
        %s315 = scalar_select %p314, %s27, 1
        %s316 = scalar_lea.vmem %s3, %s315
        %p317 = scmp.lt.s32.totalorder %s27, 1
        %s318 = scalar_select %p317, %s27, 1
        %s319 = scalar_lea.vmem %s4, %s318
        %p320 = scmp.eq.s32.totalorder %s28, 0
        %p321 = scmp.eq.s32.totalorder %s29, 0
        %p322 = pnand %p320, %p321
        %p323 = pneg %p322
        // Predicated region
        $region37: #{tpu_custom_call.1} parent=27 // pred_check
          _
        $region38: #{tpu_custom_call.1} parent=27 // pred_check_branch
          %325 = sbr.rel (%p322) target = $region40
        $region39: #{tpu_custom_call.1} parent=27 // pred_region
          %v326 = vlaneseq
          %vm327 = vcmp.ge.s32.totalorder %v326, 0
          %vm328 = vcmp.lt.s32.totalorder %v326, 256
          %vm329 = vmand %vm327, %vm328
          %330 = vst.msk [vmem:[#allocation2] sm:$0x3] %vm329, 0.0
          %331 = vst.msk [vmem:[#allocation3] sm:$0x3] %vm329, 0.0
          %332 = vst.msk [vmem:[#allocation4] sm:$0x3] %vm329, 0.0
        $region40: #{tpu_custom_call.1} parent=27 // pred_fallthru
          _
        %v333 = vld [vmem:[%s260] sm:$0xff]
        %v334 = vld [vmem:[%s269] sm:$0x3]
        %s335 = sadd.s32 %s27, %s29
        %s336 = smul.u32 %s335, 256
        %v337 = vlaneseq
        %v338 = vand.u32 %v337, 127
        %v339 = vadd.s32 %v338, 128
        %v340 = vstv %s336
        %v341 = vadd.s32 %v340, %v338
        %v342 = vadd.s32 %v340, %v339
        %vm343 = vcmp.lt.s32.totalorder %v341, 256
        %vm344 = vcmp.lt.s32.totalorder %v342, 256
        %vm345 = vcmp.ne.s32.totalorder %v334, 250
        %v346 = vsel %vm345, 1, 0
        %v347 = vlaneseq
        %v348 = vshrl.u32 %v347, 7
        %v349 = vsub.s32 0, %v348
        %v350 = vrot.slane %v346, %v349
        %v351 = vlaneseq
        %v352 = vshrl.u32 %v351, 7
        %v353 = vsub.s32 1, %v352
        %v354 = vrot.slane %v346, %v353
        %vm355 = vcmp.ne.s32.totalorder %v350, 0
        %vm356 = vcmp.ne.s32.totalorder %v354, 0
        %vm357 = vmand %vm343, %vm355
        %vm358 = vmand %vm344, %vm356
        %v359 = vsel %vm357, 1, 0
        %v360 = vsel %vm358, 1, 0
        %v361 = vcvt.s32.f32 %v359
        %v362 = vcvt.s32.f32 %v360
        %v363 = vsel %vm343, 1, 0
        %v364 = vsel %vm344, 1, 0
        %vm365 = vcmp.eq.s32.totalorder %v363, 1
        %vm366 = vcmp.eq.s32.totalorder %v364, 1
        %v368 = vcombine.high %v333, %v333
        %v370 = vsel %vm365, %v333, 0.0
        %v371 = vsel %vm366, %v368, 0.0
        %vm372 = vcmask 1043456
        %v373 = vsel %vm372, %v370, -inf
        %v374 = vrot.slane %v373, 4
        %v375 = vmax.f32 %v373, %v374
        %v376 = vrot.slane %v375, 2
        %v377 = vmax.f32 %v375, %v376
        %v378 = vrot.slane %v377, 1
        %v379 = vmax.f32 %v377, %v378
        %v380 = vsel %vm372, %v371, -inf
        %v381 = vrot.slane %v380, 4
        %v382 = vmax.f32 %v380, %v381
        %v383 = vrot.slane %v382, 2
        %v384 = vmax.f32 %v382, %v383
        %v385 = vrot.slane %v384, 1
        %v386 = vmax.f32 %v384, %v385
        %v387 = vsub.f32 %v370, %v379
        %v388 = vsub.f32 %v371, %v386
        %v389 = vmul.f32 %v387, 1.442695
        %v390 = vpow.pop %v389
        %v391 = vmul.f32 %v388, 1.442695
        %v392 = vpow.pop %v391
        %v393 = vsel %vm372, %v390, 0.0
        %v394 = vrot.slane %v393, 4
        %v395 = vadd.f32 %v393, %v394
        %v396 = vrot.slane %v395, 2
        %v397 = vadd.f32 %v395, %v396
        %v398 = vrot.slane %v397, 1
        %v399 = vadd.f32 %v397, %v398
        %v400 = vsel %vm372, %v392, 0.0
        %v401 = vrot.slane %v400, 4
        %v402 = vadd.f32 %v400, %v401
        %v403 = vrot.slane %v402, 2
        %v404 = vadd.f32 %v402, %v403
        %v405 = vrot.slane %v404, 1
        %v406 = vadd.f32 %v404, %v405
        %v407 = vlog2.pop %v399
        %v408 = vmul.f32 %v407, 0.6931472
        %v409 = vlog2.pop %v406
        %v410 = vmul.f32 %v409, 0.6931472
        %v411 = vadd.f32 %v408, %v379
        %v412 = vadd.f32 %v410, %v386
        %v413 = vlaneseq
        %v414 = vshrl.u32 %v413, 7
        %v415 = vlaneseq
        %v416 = vshrl.u32 %v415, 7
        %v417 = vsub.s32 0, %v416
        %v418 = vrot.slane %v334, %v417
        %v419 = vlaneseq
        %v420 = vshrl.u32 %v419, 7
        %v421 = vsub.s32 1, %v420
        %v422 = vrot.slane %v334, %v421
        %vm423 = vcmp.eq.s32.totalorder %v414, %v418
        %vm424 = vcmp.eq.s32.totalorder %v414, %v422
        %v425 = vsel %vm423, %v370, 0.0
        %v426 = vsel %vm424, %v371, 0.0
        %v427 = vsel %vm372, %v425, 0.0
        %v428 = vrot.slane %v427, 4
        %v429 = vadd.f32 %v427, %v428
        %v430 = vrot.slane %v429, 2
        %v431 = vadd.f32 %v429, %v430
        %v432 = vrot.slane %v431, 1
        %v433 = vadd.f32 %v431, %v432
        %v434 = vsel %vm372, %v426, 0.0
        %v435 = vrot.slane %v434, 4
        %v436 = vadd.f32 %v434, %v435
        %v437 = vrot.slane %v436, 2
        %v438 = vadd.f32 %v436, %v437
        %v439 = vrot.slane %v438, 1
        %v440 = vadd.f32 %v438, %v439
        %v441 = vld [vmem:[#allocation2] sm:$0x3]
        %v442 = vsub.f32 %v411, %v433
        %v443 = vsub.f32 %v412, %v440
        %v444 = vmul.f32 %v442, %v361
        %v445 = vmul.f32 %v443, %v362
        %v448 = vcombine.low %v444, %v445
        %v450 = vunpack.c.l.s4 1966171168
        %v451 = vunpack.c.0.s8 %v450
        %v452 = vlaneseq
        %v453 = vshrl.u32 %v452, 7
        %v454 = vsub.s32 %v451, %v453
        %v455 = vrot.slane %v448, %v454
        %v457 = vunpack.c.l.s4 1966171168
        %v458 = vunpack.c.0.s8 %v457
        %v459 = vlaneseq
        %v460 = vshrl.u32 %v459, 7
        %v461 = vsub.s32 %v458, %v460
        %v462 = vrot.slane %v455, %v461
        %v464 = vadd.f32 %v441, %v462
        %v465 = vlaneseq
        %vm466 = vcmp.ge.s32.totalorder %v465, 0
        %vm467 = vcmp.lt.s32.totalorder %v465, 256
        %vm468 = vmand %vm466, %vm467
        %469 = vst.msk [vmem:[#allocation2] sm:$0x3] %vm468, %v464
        %v470 = vld [vmem:[#allocation3] sm:$0x3]
        %v473 = vcombine.low %v361, %v362
        %v475 = vunpack.c.l.s4 1966171168
        %v476 = vunpack.c.0.s8 %v475
        %v477 = vlaneseq
        %v478 = vshrl.u32 %v477, 7
        %v479 = vsub.s32 %v476, %v478
        %v480 = vrot.slane %v473, %v479
        %v482 = vunpack.c.l.s4 1966171168
        %v483 = vunpack.c.0.s8 %v482
        %v484 = vlaneseq
        %v485 = vshrl.u32 %v484, 7
        %v486 = vsub.s32 %v483, %v485
        %v487 = vrot.slane %v480, %v486
        %v489 = vadd.f32 %v470, %v487
        %490 = vst.msk [vmem:[#allocation3] sm:$0x3] %vm468, %v489
        %v491 = vld [vmem:[#allocation4] sm:$0x3]
        %v492 = vsub.f32 %v433, %v411
        %v493 = vsub.f32 %v440, %v412
        %v494 = vmul.f32 %v492, 1.442695
        %v495 = vpow.pop %v494
        %v496 = vmul.f32 %v493, 1.442695
        %v497 = vpow.pop %v496
        %v498 = vmul.f32 %v495, %v361
        %v499 = vmul.f32 %v497, %v362
        %v502 = vcombine.low %v498, %v499
        %v504 = vunpack.c.l.s4 1966171168
        %v505 = vunpack.c.0.s8 %v504
        %v506 = vlaneseq
        %v507 = vshrl.u32 %v506, 7
        %v508 = vsub.s32 %v505, %v507
        %v509 = vrot.slane %v502, %v508
        %v511 = vunpack.c.l.s4 1966171168
        %v512 = vunpack.c.0.s8 %v511
        %v513 = vlaneseq
        %v514 = vshrl.u32 %v513, 7
        %v515 = vsub.s32 %v512, %v514
        %v516 = vrot.slane %v509, %v515
        %v518 = vadd.f32 %v491, %v516
        %519 = vst.msk [vmem:[#allocation4] sm:$0x3] %vm468, %v518
        %p520 = scmp.eq.s32.totalorder %s28, 1
        %p521 = pnand %p520, %p321
        %p522 = pneg %p521
        // Predicated region
        $region41: #{tpu_custom_call.1} parent=27 // pred_check
          _
        $region42: #{tpu_custom_call.1} parent=27 // pred_check_branch
          %524 = sbr.rel (%p521) target = $region44
        $region43: #{tpu_custom_call.1} parent=27 // pred_region
          %v525 = vld [vmem:[#allocation2] sm:$0x3]
          %v527 = vlaneseq
          %v528 = vshrl.u32 %v527, 7
          %v529 = vsub.s32 0, %v528
          %v530 = vrot.slane %v525, %v529
          %v531 = vlaneseq
          %v532 = vshrl.u32 %v531, 7
          %v533 = vsub.s32 1, %v532
          %v534 = vrot.slane %v525, %v533
          %vm537 = vcmask 1040384
          %v538 = vsel %vm537, %v530, 0.0
          %v539 = vsel %vm537, %v534, 0.0
          %v540 = vadd.f32 %v538, %v539
          %541 = vadd.xlane.f32.xlu0 %v540
          %v542 = vpop.xlane.xlu0 %541
          %vm543 = vcmask 0
          %544 = vst.msk [vmem:[%s313] sm:$0x1] %vm543, %v542
          %v545 = vld [vmem:[#allocation3] sm:$0x3]
          %v547 = vlaneseq
          %v548 = vshrl.u32 %v547, 7
          %v549 = vsub.s32 0, %v548
          %v550 = vrot.slane %v545, %v549
          %v551 = vlaneseq
          %v552 = vshrl.u32 %v551, 7
          %v553 = vsub.s32 1, %v552
          %v554 = vrot.slane %v545, %v553
          %v557 = vsel %vm537, %v550, 0.0
          %v558 = vsel %vm537, %v554, 0.0
          %v559 = vadd.f32 %v557, %v558
          %560 = vadd.xlane.f32.xlu0 %v559
          %v561 = vpop.xlane.xlu0 %560
          %562 = vst.msk [vmem:[%s316] sm:$0x1] %vm543, %v561
          %v563 = vld [vmem:[#allocation4] sm:$0x3]
          %v565 = vlaneseq
          %v566 = vshrl.u32 %v565, 7
          %v567 = vsub.s32 0, %v566
          %v568 = vrot.slane %v563, %v567
          %v569 = vlaneseq
          %v570 = vshrl.u32 %v569, 7
          %v571 = vsub.s32 1, %v570
          %v572 = vrot.slane %v563, %v571
          %v575 = vsel %vm537, %v568, 0.0
          %v576 = vsel %vm537, %v572, 0.0
          %v577 = vadd.f32 %v575, %v576
          %578 = vadd.xlane.f32.xlu0 %v577
          %v579 = vpop.xlane.xlu0 %578
          %580 = vst.msk [vmem:[%s319] sm:$0x1] %vm543, %v579
        $region44: #{tpu_custom_call.1} parent=27 // pred_fallthru
          _
        %p581 = scmp.lt.s32.totalorder %s27, 1
        %s582 = scalar_select %p581, %s27, 1
        %s583 = scalar_lea.vmem %s2, %s582
        %p584 = scmp.lt.s32.totalorder %s27, 1
        %s585 = scalar_select %p584, %s27, 1
        %s586 = scalar_lea.vmem %s3, %s585
        %p587 = scmp.lt.s32.totalorder %s27, 1
        %s588 = scalar_select %p587, %s27, 1
        %s589 = scalar_lea.vmem %s4, %s588
        // Predicated region
        $region45: #{tpu_custom_call.1} parent=27 // pred_check
          %p590 = pneg %p127
        $region46: #{tpu_custom_call.1} parent=27 // pred_check_branch
          %592 = sbr.rel (%p590) target = $region48
        $region47: #{tpu_custom_call.1} parent=27 // pred_region
          _
        $region48: #{tpu_custom_call.1} parent=27 // pred_fallthru
          _
        // Predicated region
        $region49: #{tpu_custom_call.1} parent=27 // pred_check
          %p593 = pneg %p153
        $region50: #{tpu_custom_call.1} parent=27 // pred_check_branch
          %595 = sbr.rel (%p593) target = $region52
        $region51: #{tpu_custom_call.1} parent=27 // pred_region
          _
        $region52: #{tpu_custom_call.1} parent=27 // pred_fallthru
          _
        // Predicated region
        $region53: #{tpu_custom_call.1} parent=27 // pred_check
          %p596 = pneg %p179
        $region54: #{tpu_custom_call.1} parent=27 // pred_check_branch
          %598 = sbr.rel (%p596) target = $region56
        $region55: #{tpu_custom_call.1} parent=27 // pred_region
          _
        $region56: #{tpu_custom_call.1} parent=27 // pred_fallthru
          _
      $region28: #{tpu_custom_call.1} parent=5 // pred_fallthru
        _
      %p599 = scmp.le.s32.totalorder 2, %s17
      // Predicated region
      $region57: #{tpu_custom_call.1} parent=5 // pred_check
        %p600 = pneg %p599
      $region58: #{tpu_custom_call.1} parent=5 // pred_check_branch
        %602 = sbr.rel (%p600) target = $region60
      $region59: #{tpu_custom_call.1} parent=5 // pred_region
        %s603 = ssub.s32 %s17, 2
        // Predicated region
        $region61: #{tpu_custom_call.1} parent=59 // pred_check
          %p604 = pneg %p133
        $region62: #{tpu_custom_call.1} parent=59 // pred_check_branch
          %606 = sbr.rel (%p604) target = $region64
        $region63: #{tpu_custom_call.1} parent=59 // pred_region
          %p607 = scmp.lt.s32.totalorder %s30, 1
          %s608 = scalar_select %p607, %s30, 1
          %s609 = scalar_lea.vmem %s2, %s608
        $region64: #{tpu_custom_call.1} parent=59 // pred_fallthru
          _
        // Predicated region
        $region65: #{tpu_custom_call.1} parent=59 // pred_check
          %p610 = pneg %p159
        $region66: #{tpu_custom_call.1} parent=59 // pred_check_branch
          %612 = sbr.rel (%p610) target = $region68
        $region67: #{tpu_custom_call.1} parent=59 // pred_region
          %p613 = scmp.lt.s32.totalorder %s30, 1
          %s614 = scalar_select %p613, %s30, 1
          %s615 = scalar_lea.vmem %s3, %s614
        $region68: #{tpu_custom_call.1} parent=59 // pred_fallthru
          _
        // Predicated region
        $region69: #{tpu_custom_call.1} parent=59 // pred_check
          %p616 = pneg %p185
        $region70: #{tpu_custom_call.1} parent=59 // pred_check_branch
          %618 = sbr.rel (%p616) target = $region72
        $region71: #{tpu_custom_call.1} parent=59 // pred_region
          %p619 = scmp.lt.s32.totalorder %s30, 1
          %s620 = scalar_select %p619, %s30, 1
          %s621 = scalar_lea.vmem %s4, %s620
        $region72: #{tpu_custom_call.1} parent=59 // pred_fallthru
          _
      $region60: #{tpu_custom_call.1} parent=5 // pred_fallthru
        _
    $region6: #{tpu_custom_call.1} parent=1 // loop_footer
      %s21 = sadd.s32 1, %s17
    $region7: #{tpu_custom_call.1} parent=1 // loop_footer_branch
      %16 = sbr.rel target = $region3
    $region8: #{tpu_custom_call.1} parent=1 // loop_exit
      _
    %622 = vsyncpa [#allocation6], 1
    %s623 = scalar_lea.sflag [#allocation6], 1
    %624 = vsyncpa %s623, 1
    %625 = vsyncpa [#allocation8], 1
    %s626 = scalar_lea.sflag [#allocation8], 1
    %627 = vsyncpa %s626, 1

</llo_original>
